<compile_context>
chip_gen: v6e
topology: v6e:2x2x1
jax: 0.10.0
libtpu: 0.0.40
codegen_flags: <defaults>
</compile_context>

<pallas_src>
import functools

import jax
import jax.numpy as jnp
from jax.experimental import pallas as pl
from jax.experimental.pallas import tpu as pltpu

EPS = 1e-5          # PyTorch GroupNorm default eps
LANE = 128          # lane width: pad channel axes to multiples of this


# ----------------------------- helpers -----------------------------

def _round_up(x, m):
    return (x + m - 1) // m * m


def _pad_lane(a, target):
    c = a.shape[-1]
    if c == target:
        return a
    pad = [(0, 0)] * (a.ndim - 1) + [(0, target - c)]
    return jnp.pad(a, pad)


def _vmem_budget_bytes():
    """Generation-aware scoped-VMEM budget (v5e/v6e: 128 MiB physical, v7x: 64 MiB)."""
    cap = None
    try:
        cap = int(pltpu.get_tpu_info().vmem_capacity_bytes)
    except Exception:
        cap = None
    if not cap:
        cap = 64 * 1024 * 1024            # conservative default (v7x per-TC physical)
    return min((cap * 3) // 4, 96 * 1024 * 1024)


def _pick_block_rows(N, H, W, cin_p, cout_p, x_bytes, budget):
    """Largest divisor TH of H whose (worst over both conv kernels) VMEM footprint fits ~80%
    of the budget, preferring >= 2 total grid tiles so both v7x TensorCores get work."""
    mxu_b, inter_b, f32_b = 2, 2, 4
    usable = int(budget * 0.8)

    def fits(th):
        conv1 = (2 * th * W * cin_p * x_bytes            # core input (double-buffered)
                 + 4 * W * cin_p * x_bytes                # two 1-row halos
                 + 2 * th * W * cout_p * inter_b          # bf16 h output
                 + 2 * 9 * cin_p * cout_p * mxu_b         # conv weights
                 + (th + 2) * (W + 2) * cin_p * mxu_b     # padded-input scratch
                 + th * W * cout_p * f32_b                # fp32 accumulator scratch
                 + 2 * 2 * 2 * cout_p * f32_b)            # GN2 stats partials
        conv2 = (2 * th * W * cout_p * inter_b            # h input
                 + 4 * W * cout_p * inter_b
                 + 2 * th * W * cin_p * x_bytes           # shortcut x
                 + 2 * th * W * cout_p * f32_b            # fp32 output
                 + 2 * (9 * cout_p * cout_p + cin_p * cout_p) * mxu_b
                 + (th + 2) * (W + 2) * cout_p * mxu_b
                 + th * W * cout_p * f32_b)
        return max(conv1, conv2) <= usable

    divs = [d for d in range(1, H + 1) if H % d == 0]
    ok = [d for d in divs if fits(d)]
    if not ok:
        return divs[0]
    multi = [d for d in ok if N * (H // d) >= 2]
    return max(multi) if multi else max(ok)


# ----------------------------- GroupNorm-1 statistics kernel -----------------------------

def _gn_stats_kernel(x_ref, o_ref):
    # x_ref: (1, TH, W, C)   o_ref: (1, 1, 2, C) per-tile partial (reduced outside).
    x = x_ref[0].astype(jnp.float32)                      # (TH, W, C)
    th, w, c = x.shape
    xs = x.reshape(th * w, c)                             # C stays on the lane axis
    s = jnp.sum(xs, axis=0, keepdims=True)                # (1, C)
    s2 = jnp.sum(xs * xs, axis=0, keepdims=True)          # (1, C)
    o_ref[...] = jnp.concatenate([s, s2], axis=0).reshape(1, 1, 2, c)


def gn_stats(x, *, block_rows, vmem_limit):
    """Per-(image, tile, channel) sum / sum-of-squares partials; reduce the tile axis outside."""
    N, H, W, C = x.shape
    TH = block_rows
    nt = H // TH
    return pl.pallas_call(
        _gn_stats_kernel,
        out_shape=jax.ShapeDtypeStruct((N, nt, 2, C), jnp.float32),
        grid=(N, nt),
        in_specs=[pl.BlockSpec((1, TH, W, C), lambda n, h: (n, h, 0, 0))],
        out_specs=pl.BlockSpec((1, 1, 2, C), lambda n, h: (n, h, 0, 0)),
        compiler_params=pltpu.CompilerParams(
            dimension_semantics=("parallel", "parallel"),
            vmem_limit_bytes=vmem_limit),
    )(x)


def gn_scale_shift(stats, gamma, beta, groups, hw):
    """Fold GroupNorm (mean, rstd) and the affine (gamma, beta) into per-channel scale/shift.
    Tiny (N, C)-sized math; runs as plain XLA ops outside the kernels."""
    N, _, C = stats.shape
    cg = C // groups
    cnt = hw * cg
    s = stats[:, 0, :].reshape(N, groups, cg).sum(axis=-1)
    s2 = stats[:, 1, :].reshape(N, groups, cg).sum(axis=-1)
    mean = s / cnt
    var = s2 / cnt - mean * mean
    # TODO(synk): E[x^2]-E[x]^2 can cancel for |mean|>>std; switch to a shifted/Welford
    # accumulation if GN precision at extreme activation scales ever matters.
    rstd = jax.lax.rsqrt(jnp.maximum(var, 0.0) + EPS)
    mean_c = jnp.repeat(mean, cg, axis=1)                 # (N, C)
    rstd_c = jnp.repeat(rstd, cg, axis=1)
    scale = gamma[None, :] * rstd_c
    shift = beta[None, :] - mean_c * scale
    return scale.astype(jnp.float32), shift.astype(jnp.float32)


# ------------------- fused GN+SiLU -> conv3x3 (-> +shortcut / -> GN2 stats) kernel -------------------

def _fused_gn_silu_conv_kernel(*refs, mode, emit_stats, act_dtype):
    # Ref order: core(1,TH,W,Cin), top(1,1,W,Cin), bot(1,1,W,Cin), scale(1,1,Cin),
    #   shift(1,1,Cin), w9(9,Cin,Cout), b(1,Cout), [sc(1,TH,W,Csc)], [ws(Csc,Cout), bs(1,Cout)],
    #   o(1,TH,W,Cout), [st(1,1,2,Cout)], hp((TH+2,W+2,Cin) mxu dtype), acc((TH*W,Cout) f32).
    core_ref, top_ref, bot_ref, scale_ref, shift_ref, wf_ref, b_ref = refs[:7]
    idx = 7
    sc_ref = ws_ref = bs_ref = None
    if mode != "none":
        sc_ref = refs[idx]; idx += 1
    if mode == "project":
        ws_ref, bs_ref = refs[idx], refs[idx + 1]; idx += 2
    o_ref = refs[idx]; idx += 1
    st_ref = None
    if emit_stats:
        st_ref = refs[idx]; idx += 1
    hp, acc = refs[idx], refs[idx + 1]

    TH, W, Cin = core_ref.shape[1], core_ref.shape[2], core_ref.shape[3]
    Cout = o_ref.shape[3]
    ht = pl.program_id(1)
    nt = pl.num_programs(1)

    scale = scale_ref[...].reshape(1, 1, Cin).astype(act_dtype)
    shift = shift_ref[...].reshape(1, 1, Cin).astype(act_dtype)

    def gn_silu(v):
        # GroupNorm normalize+affine and SiLU (fp32 default; bf16 optional on v6e/v7x).
        y = v.astype(act_dtype) * scale + shift
        return (y * jax.nn.sigmoid(y)).astype(hp.dtype)

    # SAME-padded conv input in VMEM. Zero only the 1-px border (interior fully overwritten):
    hp[:, 0:1, :] = jnp.zeros((TH + 2, 1, Cin), hp.dtype)            # left pad column
    hp[:, W + 1:W + 2, :] = jnp.zeros((TH + 2, 1, Cin), hp.dtype)    # right pad column
    hp[1:TH + 1, 1:W + 1, :] = gn_silu(core_ref[0])

    @pl.when(ht > 0)                      # real row above this tile
    def _():
        hp[0:1, 1:W + 1, :] = gn_silu(top_ref[0])

    @pl.when(ht == 0)                     # top of the image -> zero pad row
    def _():
        hp[0:1, 1:W + 1, :] = jnp.zeros((1, W, Cin), hp.dtype)

    @pl.when(ht < nt - 1)                 # real row below this tile
    def _():
        hp[TH + 1:TH + 2, 1:W + 1, :] = gn_silu(bot_ref[0])

    @pl.when(ht == nt - 1)                # bottom of the image -> zero pad row
    def _():
        hp[TH + 1:TH + 2, 1:W + 1, :] = jnp.zeros((1, W, Cin), hp.dtype)

    # 3x3 conv = 9 MXU dots of K=Cin, accumulated into a fp32 VMEM scratch (no giant SSA acc).
    first = True
    for ky in range(3):
        for kx in range(3):
            win = hp[ky:ky + TH, kx:kx + W, :].reshape(TH * W, Cin)
            d = jnp.dot(win, wf_ref[ky * 3 + kx], preferred_element_type=jnp.float32)
            if first:
                acc[...] = d
                first = False
            else:
                acc[...] += d

    res = acc[...] + b_ref[...].astype(jnp.float32)                  # (TH*W, Cout), fp32

    # Fused residual epilogue.
    if mode == "identity":
        res = res + sc_ref[0].reshape(TH * W, Cout).astype(jnp.float32)
    elif mode == "project":
        csc = sc_ref.shape[3]
        xs = sc_ref[0].reshape(TH * W, csc).astype(ws_ref.dtype)
        res = res + jnp.dot(xs, ws_ref[...], preferred_element_type=jnp.float32)
        res = res + bs_ref[...].astype(jnp.float32)

    # Fused GroupNorm-2 statistics epilogue (per-tile partials, fp32, pre output cast).
    if emit_stats:
        s = jnp.sum(res, axis=0, keepdims=True)                       # (1, Cout)
        s2 = jnp.sum(res * res, axis=0, keepdims=True)
        st_ref[...] = jnp.concatenate([s, s2], axis=0).reshape(1, 1, 2, Cout)

    o_ref[0] = res.reshape(TH, W, Cout).astype(o_ref.dtype)


def fused_gn_silu_conv3x3(x, scale, shift, w9, b, *, shortcut=None, ws=None, bs=None,
                          emit_stats=False, out_dtype=None, block_rows=8,
                          mxu_dtype=jnp.bfloat16, act_dtype=jnp.float32,
                          vmem_limit=48 * 1024 * 1024):
    """out = conv3x3(silu(x*scale+shift)) [+shortcut | +conv1x1(shortcut)]  (NHWC, padded C)."""
    N, H, W, Cin = x.shape
    Cout = w9.shape[-1]
    TH = block_rows
    nt = H // TH
    out_dtype = x.dtype if out_dtype is None else out_dtype

    if shortcut is None:
        mode = "none"
    elif ws is None:
        mode = "identity"
    else:
        mode = "project"

    core_spec = pl.BlockSpec((1, TH, W, Cin), lambda n, h: (n, h, 0, 0))
    # 1-row halos: same input array, block height 1, clamped row index (masked in-kernel).
    top_spec = pl.BlockSpec((1, 1, W, Cin),
                            lambda n, h: (n, jnp.maximum(h * TH - 1, 0), 0, 0))
    bot_spec = pl.BlockSpec((1, 1, W, Cin),
                            lambda n, h: (n, jnp.minimum((h + 1) * TH, H - 1), 0, 0))

    inputs = [x, x, x,
              scale.reshape(N, 1, Cin).astype(jnp.float32),
              shift.reshape(N, 1, Cin).astype(jnp.float32),
              w9.astype(mxu_dtype),
              b.reshape(1, Cout).astype(jnp.float32)]
    # TODO(synk): pipeline_mode=pl.Buffered(1) on the grid-invariant specs below (w9/b/scale/
    # shift/ws/bs) would skip their double buffer and free VMEM for a bigger TH.
    in_specs = [core_spec, top_spec, bot_spec,
                pl.BlockSpec((1, 1, Cin), lambda n, h: (n, 0, 0)),
                pl.BlockSpec((1, 1, Cin), lambda n, h: (n, 0, 0)),
                pl.BlockSpec((9, Cin, Cout), lambda n, h: (0, 0, 0)),
                pl.BlockSpec((1, Cout), lambda n, h: (0, 0))]

    if mode != "none":
        Csc = shortcut.shape[-1]
        inputs.append(shortcut)
        in_specs.append(pl.BlockSpec((1, TH, W, Csc), lambda n, h: (n, h, 0, 0)))
    if mode == "project":
        inputs += [ws.astype(mxu_dtype), bs.reshape(1, Cout).astype(jnp.float32)]
        in_specs += [pl.BlockSpec((ws.shape[0], Cout), lambda n, h: (0, 0)),
                     pl.BlockSpec((1, Cout), lambda n, h: (0, 0))]

    out_shapes = [jax.ShapeDtypeStruct((N, H, W, Cout), out_dtype)]
    out_specs = [pl.BlockSpec((1, TH, W, Cout), lambda n, h: (n, h, 0, 0))]
    if emit_stats:
        out_shapes.append(jax.ShapeDtypeStruct((N, nt, 2, Cout), jnp.float32))
        out_specs.append(pl.BlockSpec((1, 1, 2, Cout), lambda n, h: (n, h, 0, 0)))

    kernel = functools.partial(_fused_gn_silu_conv_kernel, mode=mode,
                               emit_stats=emit_stats, act_dtype=act_dtype)
    return pl.pallas_call(
        kernel,
        out_shape=tuple(out_shapes) if emit_stats else out_shapes[0],
        grid=(N, nt),
        in_specs=in_specs,
        out_specs=out_specs if emit_stats else out_specs[0],
        scratch_shapes=[pltpu.VMEM((TH + 2, W + 2, Cin), mxu_dtype),
                        pltpu.VMEM((TH * W, Cout), jnp.float32)],
        compiler_params=pltpu.CompilerParams(
            dimension_semantics=("parallel", "parallel"),
            vmem_limit_bytes=vmem_limit),
    )(*inputs)


# ----------------------------- ResnetBlock forward -----------------------------

def resnet_block_forward_nhwc(x, params, groups, *, block_rows=None,
                              mxu_dtype=jnp.bfloat16, act_dtype=jnp.float32,
                              inter_dtype=jnp.bfloat16):
    """ResnetBlock forward (eval mode; dropout is identity), NHWC in / NHWC out."""
    N, H, W, Cin = x.shape
    Cout = params["w1"].shape[-1]
    Cp_in, Cp_out = _round_up(Cin, LANE), _round_up(Cout, LANE)

    # Lane-dense padding: weights/bias/scale/shift padded with zeros so padded channels stay 0.
    xp = _pad_lane(x, Cp_in)
    w1p = jnp.pad(params["w1"], ((0, 0), (0, 0), (0, Cp_in - Cin), (0, Cp_out - Cout))
                  ).reshape(9, Cp_in, Cp_out).astype(mxu_dtype)
    w2p = jnp.pad(params["w2"], ((0, 0), (0, 0), (0, Cp_out - Cout), (0, Cp_out - Cout))
                  ).reshape(9, Cp_out, Cp_out).astype(mxu_dtype)
    bc1p = _pad_lane(params["bc1"], Cp_out).reshape(1, Cp_out)
    bc2p = _pad_lane(params["bc2"], Cp_out).reshape(1, Cp_out)
    if params.get("ws") is not None:
        wsp = jnp.pad(params["ws"], ((0, Cp_in - Cin), (0, Cp_out - Cout))).astype(mxu_dtype)
        bsp = _pad_lane(params["bs"], Cp_out).reshape(1, Cp_out)
    else:
        wsp = bsp = None

    budget = _vmem_budget_bytes()
    TH = block_rows if block_rows is not None else \
        _pick_block_rows(N, H, W, Cp_in, Cp_out, x.dtype.itemsize, budget)
    assert H % TH == 0, (H, TH)

    # GroupNorm-1 statistics need the full HxW extent of x -> separate first pass (partials).
    st1 = jnp.sum(gn_stats(xp, block_rows=TH, vmem_limit=budget), axis=1)[:, :, :Cin]
    sc1, sh1 = gn_scale_shift(st1, params["g1"], params["b1"], groups, H * W)
    sc1, sh1 = _pad_lane(sc1, Cp_in), _pad_lane(sh1, Cp_in)

    # conv1 with fused GN1-normalize+SiLU prologue and fused GN2-statistics epilogue;
    # intermediate h written in bf16 (halves its HBM traffic).
    h, st2p = fused_gn_silu_conv3x3(
        xp, sc1, sh1, w1p, bc1p, emit_stats=True, out_dtype=inter_dtype,
        block_rows=TH, mxu_dtype=mxu_dtype, act_dtype=act_dtype, vmem_limit=budget)
    st2 = jnp.sum(st2p, axis=1)[:, :, :Cout]
    sc2, sh2 = gn_scale_shift(st2, params["g2"], params["b2"], groups, H * W)
    sc2, sh2 = _pad_lane(sc2, Cp_out), _pad_lane(sh2, Cp_out)

    # nn.Dropout in eval mode is the identity -> no-op.
    out = fused_gn_silu_conv3x3(
        h, sc2, sh2, w2p, bc2p, shortcut=xp, ws=wsp, bs=bsp, out_dtype=x.dtype,
        block_rows=TH, mxu_dtype=mxu_dtype, act_dtype=act_dtype, vmem_limit=budget)
    return out[..., :Cout]


def resnet_block_forward(x_nchw, params, groups, **kw):
    """PyTorch-facing NCHW shim.  In an NHWC model call resnet_block_forward_nhwc directly and
    these two full-tensor boundary transposes disappear."""
    x = jnp.transpose(x_nchw, (0, 2, 3, 1))                       # NCHW -> NHWC (C on lanes)
    out = resnet_block_forward_nhwc(x, params, groups, **kw)
    return jnp.transpose(out, (0, 3, 1, 2))                       # NHWC -> NCHW


# ----------------------------- pure-JAX reference -----------------------------

def _ref_gn(x, g, b, groups):
    N, H, W, C = x.shape
    xg = x.reshape(N, H * W, groups, C // groups)
    m = xg.mean(axis=(1, 3), keepdims=True)
    v = ((xg - m) ** 2).mean(axis=(1, 3), keepdims=True)
    xn = ((xg - m) * jax.lax.rsqrt(v + EPS)).reshape(N, H, W, C)
    return xn * g + b


def _ref_conv3x3(x, w, b):
    dn = ("NHWC", "HWIO", "NHWC")
    return jax.lax.conv_general_dilated(x, w, (1, 1), "SAME", dimension_numbers=dn) + b


def ref_forward(x_nchw, params, groups):
    x = jnp.transpose(x_nchw, (0, 2, 3, 1))
    h = _ref_gn(x, params["g1"], params["b1"], groups)
    h = h * jax.nn.sigmoid(h)
    h = _ref_conv3x3(h, params["w1"], params["bc1"])
    h = _ref_gn(h, params["g2"], params["b2"], groups)
    h = h * jax.nn.sigmoid(h)
    h = _ref_conv3x3(h, params["w2"], params["bc2"])
    if params.get("ws") is not None:
        xs = jnp.einsum("nhwc,cd->nhwd", x, params["ws"]) + params["bs"]
    else:
        xs = x
    return jnp.transpose(xs + h, (0, 3, 1, 2))


# ----------------------------- main -----------------------------

def make_params(key, cin, cout, groups):
    ks = jax.random.split(key, 10)
    p = {
        "g1": 1.0 + 0.1 * jax.random.normal(ks[0], (cin,), jnp.float32),
        "b1": 0.1 * jax.random.normal(ks[1], (cin,), jnp.float32),
        "w1": 0.1 * jax.random.normal(ks[2], (3, 3, cin, cout), jnp.float32),   # HWIO
        "bc1": 0.1 * jax.random.normal(ks[3], (cout,), jnp.float32),
        "g2": 1.0 + 0.1 * jax.random.normal(ks[4], (cout,), jnp.float32),
        "b2": 0.1 * jax.random.normal(ks[5], (cout,), jnp.float32),
        "w2": 0.1 * jax.random.normal(ks[6], (3, 3, cout, cout), jnp.float32),  # HWIO
        "bc2": 0.1 * jax.random.normal(ks[7], (cout,), jnp.float32),
    }
    if cin != cout:  # nin_shortcut (1x1 conv) stored as (Cin, Cout) matmul weight
        p["ws"] = 0.1 * jax.random.normal(ks[8], (cin, cout), jnp.float32)
        p["bs"] = 0.1 * jax.random.normal(ks[9], (cout,), jnp.float32)
    else:
        p["ws"] = None
        p["bs"] = None
    return p


if __name__ == "__main__":
    key = jax.random.PRNGKey(0)
    k1, k2, k3, k4 = jax.random.split(key, 4)

    # Case 1: Cin != Cout -> 1x1 nin_shortcut fused into conv2's epilogue; auto tile height.
    N, Cin, H, W, Cout, groups = 2, 8, 16, 16, 16, 4
    x1 = jax.random.normal(k1, (N, Cin, H, W), jnp.float32)
    p1 = make_params(k2, Cin, Cout, groups)
    out1 = jax.block_until_ready(resnet_block_forward(x1, p1, groups))
    ref1 = jax.block_until_ready(ref_forward(x1, p1, groups))
    assert out1.shape == (N, Cout, H, W), out1.shape
    err1 = float(jnp.max(jnp.abs(out1 - ref1)))
    rel1 = float(jnp.linalg.norm(out1 - ref1) / (jnp.linalg.norm(ref1) + 1e-12))
    # bf16 MXU operands / bf16 intermediate h with fp32 accumulation -> small deviation.
    assert err1 < 5e-2 and rel1 < 3e-2, f"project shortcut: max abs {err1}, rel fro {rel1}"

    # Case 2: Cin == Cout -> identity shortcut; forced TH=4 exercises the halo-row path.
    C2 = 16
    x2 = jax.random.normal(k3, (N, C2, H, W), jnp.float32)
    p2 = make_params(k4, C2, C2, groups)
    out2 = jax.block_until_ready(resnet_block_forward(x2, p2, groups, block_rows=4))
    ref2 = jax.block_until_ready(ref_forward(x2, p2, groups))
    assert out2.shape == (N, C2, H, W), out2.shape
    err2 = float(jnp.max(jnp.abs(out2 - ref2)))
    rel2 = float(jnp.linalg.norm(out2 - ref2) / (jnp.linalg.norm(ref2) + 1e-12))
    assert err2 < 5e-2 and rel2 < 3e-2, f"identity shortcut: max abs {err2}, rel fro {rel2}"

    print("KERNEL_OK")
</pallas_src>

<mosaic_0001>
module attributes {stable_mosaic.version = 11 : i64} {
  func.func @_gn_stats_kernel(%arg0: i32, %arg1: i32, %arg2: memref<1x16x16x128xf32, #tpu.memory_space<vmem>>, %arg3: memref<1x1x2x128xf32, #tpu.memory_space<vmem>>) attributes {dimension_semantics = [#tpu.dimension_semantics<parallel>, #tpu.dimension_semantics<parallel>], iteration_bounds = array<i64: 2, 1>, scalar_prefetch = 0 : i64, scratch_operands = 0 : i64, tpu.core_type = #tpu.core_type<tc>, window_params = [{transform_indices = @transform_0, window_bounds = array<i64: 1, 16, 16, 128>}, {transform_indices = @transform_1, window_bounds = array<i64: 1, 1, 2, 128>}]} {
    %c0 = arith.constant 0 : index
    %c0_0 = arith.constant 0 : index
    %c0_1 = arith.constant 0 : index
    %c0_2 = arith.constant 0 : index
    %0 = vector.load %arg2[%c0, %c0_0, %c0_1, %c0_2] : memref<1x16x16x128xf32, #tpu.memory_space<vmem>>, vector<1x16x16x128xf32>
    %1 = vector.shape_cast %0 : vector<1x16x16x128xf32> to vector<16x16x128xf32>
    %2 = vector.shape_cast %1 : vector<16x16x128xf32> to vector<256x128xf32>
    %cst = arith.constant dense<0.000000e+00> : vector<128xf32>
    %3 = vector.multi_reduction <add>, %2, %cst [0] : vector<256x128xf32> to vector<128xf32>
    %4 = vector.shape_cast %3 : vector<128xf32> to vector<1x128xf32>
    %5 = arith.mulf %2, %2 : vector<256x128xf32>
    %cst_3 = arith.constant dense<0.000000e+00> : vector<128xf32>
    %6 = vector.multi_reduction <add>, %5, %cst_3 [0] : vector<256x128xf32> to vector<128xf32>
    %7 = vector.shape_cast %6 : vector<128xf32> to vector<1x128xf32>
    %8 = tpu.concatenate %4, %7 in 0 : vector<1x128xf32>, vector<1x128xf32> -> vector<2x128xf32>
    %9 = vector.shape_cast %8 : vector<2x128xf32> to vector<1x1x2x128xf32>
    %c0_4 = arith.constant 0 : index
    %c0_5 = arith.constant 0 : index
    %c0_6 = arith.constant 0 : index
    %c0_7 = arith.constant 0 : index
    %10 = vector.load %arg3[%c0_4, %c0_5, %c0_6, %c0_7] : memref<1x1x2x128xf32, #tpu.memory_space<vmem>>, vector<1x1x2x128xf32>
    tpu.vector_store %arg3[%c0_4, %c0_5, %c0_6, %c0_7], %9 {strides = array<i32>} : memref<1x1x2x128xf32, #tpu.memory_space<vmem>>, vector<1x1x2x128xf32>,
    return
  }
  func.func @transform_0(%arg0: i32, %arg1: i32) -> (i32, i32, i32, i32) {
    %c0_i32 = arith.constant 0 : i32
    %c0_i32_0 = arith.constant 0 : i32
    %c0_i32_1 = arith.constant 0 : i32
    return %arg0, %arg1, %c0_i32, %c0_i32_0 : i32, i32, i32, i32
  }
  func.func @transform_1(%arg0: i32, %arg1: i32) -> (i32, i32, i32, i32) {
    %c0_i32 = arith.constant 0 : i32
    %c0_i32_0 = arith.constant 0 : i32
    %c0_i32_1 = arith.constant 0 : i32
    return %arg0, %arg1, %c0_i32, %c0_i32_0 : i32, i32, i32, i32
  }
}

</mosaic_0001>

<llo_original>
// kernel: tpu_custom_call.1
$region0: #{tpu_custom_call.1}
  #allocation0 [shape = 'u32[]', space=smem, size = 0x4, offset = 0x4, fixed_abs, tag = 'smem constant byte address 0x4 - core index']
  #allocation1 [shape = 'u32[144,128]{1,0:T(1,128)}', space=vmem, size = 0x12000, scoped, tag = 'internal scratch']
  %s0 = inlined_call_operand.hbm [shape: f32[2,16,16,128], index: 0, kind: input, shape index: {}]
  %s1 = inlined_call_operand.hbm [shape: f32[2,1,2,128], index: 1, kind: output, shape index: {}]
  %s2 = sld [smem:[#allocation0]]
  $region41: #{tpu_custom_call.1} parent=0
    _
  %s4 = ssub.s32 1, %s2
  %s5 = scalar_select 0, %s4, %s2
  $region1: #{tpu_custom_call.1} parent=0
    #allocation2 [shape = 'u8[262144]{0}', space=vmem, size = 0x40000, scoped, tag = 'input window, operand 0']
    #allocation3 [shape = 's32[2]{0}', space=sflag, size = 0x8, scoped, tag = 'scoped memory for tpu_custom_call.1']
    #allocation4 [shape = 's32[2]{0}', space=sflag, size = 0x8, scoped, tag = 'scoped memory for tpu_custom_call.1']
    #allocation5 [shape = 'u8[2048]{0}', space=vmem, size = 0x800, scoped, tag = 'output window, operand 0']
    %6 = vsyncpa [#allocation3], 0
    %s7 = scalar_lea.sflag [#allocation3], 1
    %8 = vsyncpa %s7, 0
    %9 = vsyncpa [#allocation4], 0
    %s10 = scalar_lea.sflag [#allocation4], 1
    %11 = vsyncpa %s10, 0
    loop: start=0, step=1, limit=4
    $region2: #{tpu_custom_call.1} parent=1 // loop_pre_header
      _
    $region3: #{tpu_custom_call.1} parent=1 // loop_header
      %s13 = sphi 0, %s17
      %p14 = scmp.ge.s32.totalorder %s13, 4
      %s20 = sphi 0, %s32
      %s21 = sphi 0, %s28
      %s22 = sphi 0, %s20
      %s23 = sphi 0, %s21
      %s24 = sphi 0, %s22
      %s25 = sphi 0, %s23
      %s37 = sphi 0, %s39
      %s40 = sphi 0, %s37
      %s41 = sphi 0, %s40
      %s57 = sphi 0, %s41
      %s65 = sphi 0, %s67
      %s68 = sphi 0, %s65
      %s69 = sphi 0, %s68
      %s85 = sphi 0, %s69
    $region4: #{tpu_custom_call.1} parent=1 // loop_header_branch
      %16 = sbr.rel (%p14) target = $region8
    $region5: #{tpu_custom_call.1} parent=1 // loop_body
      %s18 = ssub.s32 %s13, 1
      %s19 = ssub.s32 %s13, 2
      %s26 = sadd.s32 1, %s21
      %p27 = scmp.ge.s32.totalorder %s26, 1
      %s28 = scalar_select %p27, 0, %s26
      %s29 = sadd.s32 1, %s20
      %s30 = scalar_select %p27, %s29, %s20
      %p31 = scmp.ge.s32.totalorder %s30, 2
      %s32 = scalar_select %p31, 0, %s30
      %s33 = ssub.s32 %s20, %s32
      %s34 = ssub.s32 %s21, %s28
      %s35 = sor.u32 %s33, %s34
      %p36 = scmp.eq.s32.totalorder %s35, 0
      %s38 = sadd.s32 %s37, 1
      %s39 = scalar_select %p36, %s37, %s38
      %p42 = pneg %p36
      %p43 = scmp.eq.s32.totalorder %s13, 1
      %p44 = por %p42, %p43
      %p45 = scmp.ne.s32.totalorder %s37, %s40
      %p46 = scmp.eq.s32.totalorder %s13, 0
      %p47 = por %p45, %p46
      %p48 = scmp.ne.s32.totalorder %s37, %s40
      %p49 = scmp.eq.s32.totalorder %s18, 1
      %p50 = por %p48, %p49
      %p51 = scmp.ne.s32.totalorder %s40, %s41
      %p52 = scmp.eq.s32.totalorder %s18, 0
      %p53 = por %p51, %p52
      %p54 = scmp.ne.s32.totalorder %s40, %s41
      %p55 = scmp.eq.s32.totalorder %s19, 1
      %p56 = por %p54, %p55
      %p58 = scmp.ne.s32.totalorder %s41, %s57
      %p59 = scmp.eq.s32.totalorder %s19, 0
      %p60 = por %p58, %p59
      %s61 = ssub.s32 %s20, %s32
      %s62 = ssub.s32 %s21, %s28
      %s63 = sor.u32 %s61, %s62
      %p64 = scmp.eq.s32.totalorder %s63, 0
      %s66 = sadd.s32 %s65, 1
      %s67 = scalar_select %p64, %s65, %s66
      %p70 = pneg %p64
      %p71 = scmp.eq.s32.totalorder %s13, 1
      %p72 = por %p70, %p71
      %p73 = scmp.ne.s32.totalorder %s65, %s68
      %p74 = scmp.eq.s32.totalorder %s13, 0
      %p75 = por %p73, %p74
      %p76 = scmp.ne.s32.totalorder %s65, %s68
      %p77 = scmp.eq.s32.totalorder %s18, 1
      %p78 = por %p76, %p77
      %p79 = scmp.ne.s32.totalorder %s68, %s69
      %p80 = scmp.eq.s32.totalorder %s18, 0
      %p81 = por %p79, %p80
      %p82 = scmp.ne.s32.totalorder %s68, %s69
      %p83 = scmp.eq.s32.totalorder %s19, 1
      %p84 = por %p82, %p83
      %p86 = scmp.ne.s32.totalorder %s69, %s85
      %p87 = scmp.eq.s32.totalorder %s19, 0
      %p88 = por %p86, %p87
      %p89 = scmp.le.s32.totalorder 1, %s13
      %p90 = scmp.lt.s32.totalorder %s13, 3
      %p91 = pnand %p89, %p90
      %p92 = pneg %p91
      // Predicated region
      $region9: #{tpu_custom_call.1} parent=5 // pred_check
        _
      $region10: #{tpu_custom_call.1} parent=5 // pred_check_branch
        %94 = sbr.rel (%p91) target = $region12
      $region11: #{tpu_custom_call.1} parent=5 // pred_region
        %s95 = ssub.s32 %s13, 1
      $region12: #{tpu_custom_call.1} parent=5 // pred_fallthru
        _
      %p96 = scmp.lt.s32.totalorder %s13, 2
      // Predicated region
      $region13: #{tpu_custom_call.1} parent=5 // pred_check
        %p97 = pneg %p96
      $region14: #{tpu_custom_call.1} parent=5 // pred_check_branch
        %99 = sbr.rel (%p97) target = $region16
      $region15: #{tpu_custom_call.1} parent=5 // pred_region
        // Predicated region
        $region17: #{tpu_custom_call.1} parent=15 // pred_check
          %p100 = pneg %p47
        $region18: #{tpu_custom_call.1} parent=15 // pred_check_branch
          %102 = sbr.rel (%p100) target = $region20
        $region19: #{tpu_custom_call.1} parent=15 // pred_region
          %s103 = sand.u32 %s37, 1
          %s104 = scalar_lea.sflag [#allocation3], %s103
          %s105 = sand.u32 %s37, 1
          %s106 = smul.addr %s105, 256
          %s107 = scalar_lea.vmem [#allocation2], %s106
          %s108 = smul.u32 16, %s21
          %s110 = ssub.s32 4096, 4096
          %111 = vsyncadd %s104, %s110
          %s112 = smul.addr %s108, 2
          %s113 = smul.addr %s20, 32
          %s114 = sadd.s32 %s112, %s113
          %s115 = smul.addr %s114, 128
          %s116 = scalar_lea.hbm %s0, %s115
          %s117 = sshll.u32 %s107, 4
          %s118 = int_to_ptr.vmem [resolvable:$true] %s117
          %123 = dma.hbm_to_vmem [thread:$0]  %s116, 4096, %s118, %s104, 128, 128, 8
        $region20: #{tpu_custom_call.1} parent=15 // pred_fallthru
          _
      $region16: #{tpu_custom_call.1} parent=5 // pred_fallthru
        _
      %p124 = scmp.le.s32.totalorder 1, %s13
      %p125 = scmp.lt.s32.totalorder %s13, 3
      %p126 = pnand %p124, %p125
      %p127 = pneg %p126
      // Predicated region
      $region21: #{tpu_custom_call.1} parent=5 // pred_check
        _
      $region22: #{tpu_custom_call.1} parent=5 // pred_check_branch
        %129 = sbr.rel (%p126) target = $region24
      $region23: #{tpu_custom_call.1} parent=5 // pred_region
        %s130 = ssub.s32 %s13, 1
        %s131 = sand.u32 %s40, 1
        %s132 = scalar_lea.sflag [#allocation3], %s131
        %s133 = sand.u32 %s40, 1
        %s134 = smul.addr %s133, 256
        %s135 = scalar_lea.vmem [#allocation2], %s134
        // Predicated region
        $region25: #{tpu_custom_call.1} parent=23 // pred_check
          %p136 = pneg %p53
        $region26: #{tpu_custom_call.1} parent=23 // pred_check_branch
          %138 = sbr.rel (%p136) target = $region28
        $region27: #{tpu_custom_call.1} parent=23 // pred_region
          %139 = dma.done %s132, 4096
        $region28: #{tpu_custom_call.1} parent=23 // pred_fallthru
          _
        %s140 = sand.u32 %s40, 1
        %s141 = scalar_lea.sflag [#allocation3], %s140
        %s142 = sand.u32 %s40, 1
        %s143 = smul.addr %s142, 256
        %s144 = scalar_lea.vmem [#allocation2], %s143
        %p145 = pneg %p53
        %p146 = pneg %p50
        %p147 = pneg %p81
        %p148 = pneg %p78
        %s149 = sand.u32 %s68, 1
        %s150 = scalar_lea.sflag [#allocation4], %s149
        %s151 = sand.u32 %s68, 1
        %s152 = smul.addr %s151, 2
        %s153 = scalar_lea.vmem [#allocation5], %s152
        %s154 = smul.u32 16, %s23
        %v155 = vld [vmem:[%s135] sm:$0xff]
        %v156 = vld [vmem:[%s135 + $0x8] sm:$0xff]
        %v157 = vld [vmem:[%s135 + $0x10] sm:$0xff]
        %v158 = vld [vmem:[%s135 + $0x18] sm:$0xff]
        %v159 = vld [vmem:[%s135 + $0x20] sm:$0xff]
        %v160 = vld [vmem:[%s135 + $0x28] sm:$0xff]
        %v161 = vld [vmem:[%s135 + $0x30] sm:$0xff]
        %v162 = vld [vmem:[%s135 + $0x38] sm:$0xff]
        %v163 = vld [vmem:[%s135 + $0x40] sm:$0xff]
        %v164 = vld [vmem:[%s135 + $0x48] sm:$0xff]
        %v165 = vld [vmem:[%s135 + $0x50] sm:$0xff]
        %v166 = vld [vmem:[%s135 + $0x58] sm:$0xff]
        %v167 = vld [vmem:[%s135 + $0x60] sm:$0xff]
        %v168 = vld [vmem:[%s135 + $0x68] sm:$0xff]
        %v169 = vld [vmem:[%s135 + $0x70] sm:$0xff]
        %v170 = vld [vmem:[%s135 + $0x78] sm:$0xff]
        %v171 = vld [vmem:[%s135 + $0x80] sm:$0xff]
        %v172 = vld [vmem:[%s135 + $0x88] sm:$0xff]
        %v173 = vld [vmem:[%s135 + $0x90] sm:$0xff]
        %v174 = vld [vmem:[%s135 + $0x98] sm:$0xff]
        %v175 = vld [vmem:[%s135 + $0xa0] sm:$0xff]
        %v176 = vld [vmem:[%s135 + $0xa8] sm:$0xff]
        %v177 = vld [vmem:[%s135 + $0xb0] sm:$0xff]
        %v178 = vld [vmem:[%s135 + $0xb8] sm:$0xff]
        %v179 = vld [vmem:[%s135 + $0xc0] sm:$0xff]
        %v180 = vld [vmem:[%s135 + $0xc8] sm:$0xff]
        %v181 = vld [vmem:[%s135 + $0xd0] sm:$0xff]
        %v182 = vld [vmem:[%s135 + $0xd8] sm:$0xff]
        %v183 = vld [vmem:[%s135 + $0xe0] sm:$0xff]
        %v184 = vld [vmem:[%s135 + $0xe8] sm:$0xff]
        %v185 = vld [vmem:[%s135 + $0xf0] sm:$0xff]
        %v186 = vld [vmem:[%s135 + $0xf8] sm:$0xff]
        %v187 = vadd.f32 %v155, %v156
        %v188 = vadd.f32 %v187, %v157
        %v189 = vadd.f32 %v188, %v158
        %v190 = vadd.f32 %v189, %v159
        %v191 = vadd.f32 %v190, %v160
        %v192 = vadd.f32 %v191, %v161
        %v193 = vadd.f32 %v192, %v162
        %v194 = vadd.f32 %v193, %v163
        %v195 = vadd.f32 %v194, %v164
        %v196 = vadd.f32 %v195, %v165
        %v197 = vadd.f32 %v196, %v166
        %v198 = vadd.f32 %v197, %v167
        %v199 = vadd.f32 %v198, %v168
        %v200 = vadd.f32 %v199, %v169
        %v201 = vadd.f32 %v200, %v170
        %v202 = vadd.f32 %v201, %v171
        %v203 = vadd.f32 %v202, %v172
        %v204 = vadd.f32 %v203, %v173
        %v205 = vadd.f32 %v204, %v174
        %v206 = vadd.f32 %v205, %v175
        %v207 = vadd.f32 %v206, %v176
        %v208 = vadd.f32 %v207, %v177
        %v209 = vadd.f32 %v208, %v178
        %v210 = vadd.f32 %v209, %v179
        %v211 = vadd.f32 %v210, %v180
        %v212 = vadd.f32 %v211, %v181
        %v213 = vadd.f32 %v212, %v182
        %v214 = vadd.f32 %v213, %v183
        %v215 = vadd.f32 %v214, %v184
        %v216 = vadd.f32 %v215, %v185
        %v217 = vadd.f32 %v216, %v186
        %v218 = vrot.slane %v217, 4
        %v219 = vadd.f32 %v217, %v218
        %v220 = vrot.slane %v219, 2
        %v221 = vadd.f32 %v219, %v220
        %v222 = vrot.slane %v221, 1
        %v223 = vadd.f32 %v221, %v222
        %v224 = vmul.f32 %v155, %v155
        %v225 = vmul.f32 %v156, %v156
        %v226 = vmul.f32 %v157, %v157
        %v227 = vmul.f32 %v158, %v158
        %v228 = vmul.f32 %v159, %v159
        %v229 = vmul.f32 %v160, %v160
        %v230 = vmul.f32 %v161, %v161
        %v231 = vmul.f32 %v162, %v162
        %v232 = vmul.f32 %v163, %v163
        %v233 = vmul.f32 %v164, %v164
        %v234 = vmul.f32 %v165, %v165
        %v235 = vmul.f32 %v166, %v166
        %v236 = vmul.f32 %v167, %v167
        %v237 = vmul.f32 %v168, %v168
        %v238 = vmul.f32 %v169, %v169
        %v239 = vmul.f32 %v170, %v170
        %v240 = vmul.f32 %v171, %v171
        %v241 = vmul.f32 %v172, %v172
        %v242 = vmul.f32 %v173, %v173
        %v243 = vmul.f32 %v174, %v174
        %v244 = vmul.f32 %v175, %v175
        %v245 = vmul.f32 %v176, %v176
        %v246 = vmul.f32 %v177, %v177
        %v247 = vmul.f32 %v178, %v178
        %v248 = vmul.f32 %v179, %v179
        %v249 = vmul.f32 %v180, %v180
        %v250 = vmul.f32 %v181, %v181
        %v251 = vmul.f32 %v182, %v182
        %v252 = vmul.f32 %v183, %v183
        %v253 = vmul.f32 %v184, %v184
        %v254 = vmul.f32 %v185, %v185
        %v255 = vmul.f32 %v186, %v186
        %v256 = vadd.f32 %v224, %v225
        %v257 = vadd.f32 %v256, %v226
        %v258 = vadd.f32 %v257, %v227
        %v259 = vadd.f32 %v258, %v228
        %v260 = vadd.f32 %v259, %v229
        %v261 = vadd.f32 %v260, %v230
        %v262 = vadd.f32 %v261, %v231
        %v263 = vadd.f32 %v262, %v232
        %v264 = vadd.f32 %v263, %v233
        %v265 = vadd.f32 %v264, %v234
        %v266 = vadd.f32 %v265, %v235
        %v267 = vadd.f32 %v266, %v236
        %v268 = vadd.f32 %v267, %v237
        %v269 = vadd.f32 %v268, %v238
        %v270 = vadd.f32 %v269, %v239
        %v271 = vadd.f32 %v270, %v240
        %v272 = vadd.f32 %v271, %v241
        %v273 = vadd.f32 %v272, %v242
        %v274 = vadd.f32 %v273, %v243
        %v275 = vadd.f32 %v274, %v244
        %v276 = vadd.f32 %v275, %v245
        %v277 = vadd.f32 %v276, %v246
        %v278 = vadd.f32 %v277, %v247
        %v279 = vadd.f32 %v278, %v248
        %v280 = vadd.f32 %v279, %v249
        %v281 = vadd.f32 %v280, %v250
        %v282 = vadd.f32 %v281, %v251
        %v283 = vadd.f32 %v282, %v252
        %v284 = vadd.f32 %v283, %v253
        %v285 = vadd.f32 %v284, %v254
        %v286 = vadd.f32 %v285, %v255
        %v287 = vrot.slane %v286, 4
        %v288 = vadd.f32 %v286, %v287
        %v289 = vrot.slane %v288, 2
        %v290 = vadd.f32 %v288, %v289
        %v291 = vrot.slane %v290, 1
        %v292 = vadd.f32 %v290, %v291
        %vm293 = vcmask 1040384
        %v294 = vsel %vm293, %v223, %v292
        %295 = vst [vmem:[%s153] sm:$0x3] %v294
        %s296 = sand.u32 %s68, 1
        %s297 = scalar_lea.sflag [#allocation4], %s296
        %s298 = sand.u32 %s68, 1
        %s299 = smul.addr %s298, 2
        %s300 = scalar_lea.vmem [#allocation5], %s299
        // Predicated region
        $region29: #{tpu_custom_call.1} parent=23 // pred_check
          %p301 = pneg %p78
        $region30: #{tpu_custom_call.1} parent=23 // pred_check_branch
          %303 = sbr.rel (%p301) target = $region32
        $region31: #{tpu_custom_call.1} parent=23 // pred_region
          %s305 = ssub.s32 32, 32
          %306 = vsyncadd %s297, %s305
          %s307 = sadd.s32 %s23, %s22
          %s308 = smul.addr %s307, 32
          %s309 = scalar_lea.hbm %s1, %s308
          %s311 = sshll.u32 %s300, 4
          %s312 = int_to_ptr.vmem [resolvable:$true] %s311
          %314 = dma.vmem_to_hbm [thread:$0]  %s312, 32, %s309, %s297
        $region32: #{tpu_custom_call.1} parent=23 // pred_fallthru
          _
      $region24: #{tpu_custom_call.1} parent=5 // pred_fallthru
        _
      %p315 = scmp.le.s32.totalorder 2, %s13
      // Predicated region
      $region33: #{tpu_custom_call.1} parent=5 // pred_check
        %p316 = pneg %p315
      $region34: #{tpu_custom_call.1} parent=5 // pred_check_branch
        %318 = sbr.rel (%p316) target = $region36
      $region35: #{tpu_custom_call.1} parent=5 // pred_region
        %s319 = ssub.s32 %s13, 2
        // Predicated region
        $region37: #{tpu_custom_call.1} parent=35 // pred_check
          %p320 = pneg %p84
        $region38: #{tpu_custom_call.1} parent=35 // pred_check_branch
          %322 = sbr.rel (%p320) target = $region40
        $region39: #{tpu_custom_call.1} parent=35 // pred_region
          %s323 = sand.u32 %s69, 1
          %s324 = scalar_lea.sflag [#allocation4], %s323
          %s325 = sand.u32 %s69, 1
          %s326 = smul.addr %s325, 2
          %s327 = scalar_lea.vmem [#allocation5], %s326
          %328 = dma.done %s324, 32
        $region40: #{tpu_custom_call.1} parent=35 // pred_fallthru
          _
      $region36: #{tpu_custom_call.1} parent=5 // pred_fallthru
        _
    $region6: #{tpu_custom_call.1} parent=1 // loop_footer
      %s17 = sadd.s32 1, %s13
    $region7: #{tpu_custom_call.1} parent=1 // loop_footer_branch
      %12 = sbr.rel target = $region3
    $region8: #{tpu_custom_call.1} parent=1 // loop_exit
      _
    %329 = vsyncpa [#allocation3], 1
    %s330 = scalar_lea.sflag [#allocation3], 1
    %331 = vsyncpa %s330, 1
    %332 = vsyncpa [#allocation4], 1
    %s333 = scalar_lea.sflag [#allocation4], 1
    %334 = vsyncpa %s333, 1

</llo_original>
